<compile_context>
chip_gen: v7x
topology: tpu7x:2x2x1
jax: 0.10.0
libtpu: 0.0.40
codegen_flags: <defaults>
</compile_context>

<pallas_src>
import functools

import jax
import jax.numpy as jnp
from jax import lax
from jax.experimental import pallas as pl
from jax.experimental.pallas import tpu as pltpu


def _round_up(x, m):
    return (x + m - 1) // m * m


def _block_spec(shape, index_map, single_buffered=False):
    """BlockSpec helper; falls back to default double-buffering if the
    pipeline_mode kwarg / pl.Buffered is unavailable in the installed JAX."""
    if single_buffered:
        try:
            return pl.BlockSpec(shape, index_map, pipeline_mode=pl.Buffered(1))
        except (TypeError, AttributeError):
            pass
    return pl.BlockSpec(shape, index_map)


def _rnn_recurrence_kernel(xproj_ref, whh_ref, h0_ref, out_ref, h_scratch, *, unroll):
    """Grid = (batch_tiles [parallel], time_blocks [arbitrary/sequential]).

    xproj_ref : (t_blk, b_tile, H_pad) io_dtype  -- precomputed x@W_ih^T + bias
    whh_ref   : (H_pad, H_pad) param_dtype       -- W_hh^T, grid-invariant
    h0_ref    : (b_tile, H_pad) f32              -- initial hidden state
    out_ref   : (t_blk, b_tile, H_pad) io_dtype
    h_scratch : (b_tile, H_pad) f32              -- hidden-state carry (time blocks)
    """
    # (Re)load the initial hidden state at the first time block of each batch tile.
    @pl.when(pl.program_id(1) == 0)
    def _():
        h_scratch[...] = h0_ref[...]

    t_blk = out_ref.shape[0]
    w = whh_ref[...]  # resident recurrent weights (bf16 fast path / f32 exact path)

    def step(i, h):
        x = xproj_ref[i].astype(jnp.float32)           # cast bf16 I/O up once
        h_new = jnp.tanh(
            x + jnp.dot(h.astype(w.dtype), w, preferred_element_type=jnp.float32))
        out_ref[i] = h_new.astype(out_ref.dtype)
        return h_new                                    # carry stays f32

    # Bounded unroll: LLO scheduling visibility without spill-bound regime when
    # t_blk is large.
    h_scratch[...] = lax.fori_loop(0, t_blk, step, h_scratch[...], unroll=unroll)


def rnn_forward(inputs, W_ih, W_hh, b_ih, b_hh, H=None, *,
                t_blk=None, b_tile=None, param_dtype=jnp.bfloat16):
    """inputs: (T, B, I); PyTorch-convention weights:
       W_ih (Hd, I), W_hh (Hd, Hd), b_ih, b_hh (Hd,).  Returns (output, h_n).
       param_dtype=bf16: fast path (bf16 weights + bf16 xproj/output I/O,
       f32 accumulation + f32 hidden carry).  param_dtype=f32: exact path."""
    T, B, I = inputs.shape
    Hd = W_ih.shape[0]

    exact = (param_dtype == jnp.float32)
    io_dtype = jnp.float32 if exact else jnp.bfloat16

    # ---- tile sizes -----------------------------------------------------------
    if b_tile is None:
        # Feed the MXU row dimension, but never inflate tiny batches past the
        # sublane (8) minimum.
        b_tile = min(_round_up(B, 8), 128)
    b_tile = max(8, _round_up(b_tile, 8))
    B_pad = _round_up(B, b_tile)
    H_pad = _round_up(Hd, 128)

    io_bytes = jnp.dtype(io_dtype).itemsize
    param_bytes = jnp.dtype(param_dtype).itemsize

    if t_blk is None:
        # Conservative VMEM tile budget (~28 MiB): fits v7x's 64 MiB physical
        # VMEM with headroom; trivially fits v5e/v6e (128 MiB).
        budget = 28 * 1024 * 1024
        fixed = (H_pad * H_pad * param_bytes      # W_hh^T (single-buffered)
                 + 2 * b_tile * H_pad * 4)        # h0 (single-buffered) + carry scratch
        per_t = 2 * 2 * b_tile * H_pad * io_bytes  # xproj + out, double-buffered
        t_cap = max(8, (budget - fixed) // per_t)
        t_blk = int(min(128, t_cap, _round_up(T, 8)))
    t_blk = max(8, (t_blk // 8) * 8)
    T_pad = _round_up(T, t_blk)

    n_btiles = B_pad // b_tile
    n_tblocks = T_pad // t_blk

    # ---- hoisted input projection: one big GEMM outside the recurrence -------
    x2d = inputs.reshape(T * B, I)
    bias = (b_ih + b_hh).astype(jnp.float32)
    if exact:
        xproj = jnp.dot(x2d.astype(jnp.float32), W_ih.T.astype(jnp.float32),
                        precision=lax.Precision.HIGHEST,
                        preferred_element_type=jnp.float32)
    else:
        xproj = jnp.dot(x2d.astype(param_dtype), W_ih.T.astype(param_dtype),
                        preferred_element_type=jnp.float32)
    xproj = (xproj + bias).reshape(T, B, Hd)

    # Zero-padding of T/B/H is exact here ONLY because tanh(0)=0 and padded
    # W_hh rows/cols are zero, so padded lanes stay identically zero.
    xproj = jnp.pad(xproj, ((0, T_pad - T), (0, B_pad - B), (0, H_pad - Hd)))
    xproj = xproj.astype(io_dtype)
    # Repack to batch-tile-major layout so each (t_blk, b_tile, H_pad) block is
    # a contiguous slab in HBM -> unstrided block DMAs.
    xproj = xproj.reshape(T_pad, n_btiles, b_tile, H_pad).transpose(1, 0, 2, 3)

    whh_t = jnp.pad(W_hh.T.astype(jnp.float32),
                    ((0, H_pad - Hd), (0, H_pad - Hd))).astype(param_dtype)

    if H is None:
        h0 = jnp.zeros((B_pad, H_pad), jnp.float32)
    else:
        h0 = jnp.pad(H.reshape(B, Hd).astype(jnp.float32),
                     ((0, B_pad - B), (0, H_pad - Hd)))

    grid_spec = pltpu.PrefetchScalarGridSpec(
        num_scalar_prefetch=0,
        grid=(n_btiles, n_tblocks),                  # time = trailing sequential axis
        in_specs=[
            # xproj: leading batch-tile dim squeezed out of the kernel view.
            _block_spec((None, t_blk, b_tile, H_pad), lambda bi, ti: (bi, ti, 0, 0)),
            # W_hh^T: grid-invariant -> single-buffered.
            _block_spec((H_pad, H_pad), lambda bi, ti: (0, 0), single_buffered=True),
            # h0: changes only per batch tile -> single-buffered.
            _block_spec((b_tile, H_pad), lambda bi, ti: (bi, 0), single_buffered=True),
        ],
        out_specs=_block_spec((None, t_blk, b_tile, H_pad),
                              lambda bi, ti: (bi, ti, 0, 0)),
        scratch_shapes=[pltpu.VMEM((b_tile, H_pad), jnp.float32)],  # f32 h carry
    )

    kernel = functools.partial(_rnn_recurrence_kernel, unroll=min(t_blk, 8))

    out = pl.pallas_call(
        kernel,
        out_shape=jax.ShapeDtypeStruct((n_btiles, T_pad, b_tile, H_pad), io_dtype),
        grid_spec=grid_spec,
        compiler_params=pltpu.CompilerParams(
            dimension_semantics=("parallel", "arbitrary"),
            vmem_limit_bytes=40 * 1024 * 1024,       # within v7x's 64 MiB physical VMEM
        ),
    )(xproj, whh_t, h0)

    # Unpack batch-tile-major layout back to (T, B, Hd) and drop padding.
    out = out.transpose(1, 0, 2, 3).reshape(T_pad, B_pad, H_pad)
    output = out[:T, :B, :Hd].astype(inputs.dtype)
    h_n = output[T - 1][None]                        # h_n == last output step
    return output, h_n


def _reference(inputs, W_ih, W_hh, b_ih, b_hh, H=None):
    T, B, I = inputs.shape
    Hd = W_ih.shape[0]
    h = jnp.zeros((B, Hd), jnp.float32) if H is None else H.reshape(B, Hd)
    hp = lax.Precision.HIGHEST
    outs = []
    for t in range(T):
        h = jnp.tanh(jnp.dot(inputs[t], W_ih.T, precision=hp) + b_ih
                     + jnp.dot(h, W_hh.T, precision=hp) + b_hh)
        outs.append(h)
    return jnp.stack(outs, 0), h[None]


if __name__ == "__main__":
    key = jax.random.PRNGKey(0)

    def make_params(k, num_inputs, num_hiddens):
        k1, k2, k3, k4 = jax.random.split(k, 4)
        bound = 1.0 / (num_hiddens ** 0.5)      # PyTorch nn.RNN init
        W_ih = jax.random.uniform(k1, (num_hiddens, num_inputs), minval=-bound, maxval=bound)
        W_hh = jax.random.uniform(k2, (num_hiddens, num_hiddens), minval=-bound, maxval=bound)
        b_ih = jax.random.uniform(k3, (num_hiddens,), minval=-bound, maxval=bound)
        b_hh = jax.random.uniform(k4, (num_hiddens,), minval=-bound, maxval=bound)
        return W_ih, W_hh, b_ih, b_hh

    # Small shapes consistent with the module's forward.
    T, B, num_inputs, num_hiddens = 8, 2, 4, 32
    kp, kx, kh, key = jax.random.split(key, 4)
    W_ih, W_hh, b_ih, b_hh = make_params(kp, num_inputs, num_hiddens)
    inputs = jax.random.normal(kx, (T, B, num_inputs), dtype=jnp.float32)
    H0 = jax.random.normal(kh, (1, B, num_hiddens), dtype=jnp.float32)

    ref_out, ref_hn = _reference(inputs, W_ih, W_hh, b_ih, b_hh, H0)

    # 1) Exact-semantics check (f32 path, auto tiles).
    out, h_n = rnn_forward(inputs, W_ih, W_hh, b_ih, b_hh, H0, param_dtype=jnp.float32)
    jax.block_until_ready((out, h_n))
    assert out.shape == (T, B, num_hiddens)
    assert h_n.shape == (1, B, num_hiddens)
    assert jnp.allclose(out, ref_out, atol=1e-4, rtol=1e-4)
    assert jnp.allclose(h_n, ref_hn, atol=1e-4, rtol=1e-4)

    # 2) Fast path (bf16 weights + bf16 xproj/output I/O, f32 carry).
    #    NOTE: bf16 quantization error compounds with sequence length; the
    #    tolerance below is validated at short T.
    out_bf, hn_bf = rnn_forward(inputs, W_ih, W_hh, b_ih, b_hh, H0)
    jax.block_until_ready((out_bf, hn_bf))
    assert jnp.allclose(out_bf, ref_out, atol=3e-2, rtol=3e-2)
    assert jnp.allclose(hn_bf, ref_hn, atol=3e-2, rtol=3e-2)

    # 3) H=None (zero initial state), like the module.
    out2, hn2 = rnn_forward(inputs, W_ih, W_hh, b_ih, b_hh, None, param_dtype=jnp.float32)
    jax.block_until_ready((out2, hn2))
    ref_out2, ref_hn2 = _reference(inputs, W_ih, W_hh, b_ih, b_hh, None)
    assert jnp.allclose(out2, ref_out2, atol=1e-4, rtol=1e-4)
    assert jnp.allclose(hn2, ref_hn2, atol=1e-4, rtol=1e-4)

    # 4) Multi-block grid (padding + carry across time blocks + batch tiles):
    #    forced small tiles so n_btiles > 1 and n_tblocks > 1.
    T2, B2, I2, Hd2 = 20, 20, 6, 40
    kp2, kx2, kh2, _ = jax.random.split(key, 4)
    W_ih2, W_hh2, b_ih2, b_hh2 = make_params(kp2, I2, Hd2)
    inputs2 = jax.random.normal(kx2, (T2, B2, I2), dtype=jnp.float32)
    H02 = jax.random.normal(kh2, (1, B2, Hd2), dtype=jnp.float32)
    ref_out3, ref_hn3 = _reference(inputs2, W_ih2, W_hh2, b_ih2, b_hh2, H02)
    out3, hn3 = rnn_forward(inputs2, W_ih2, W_hh2, b_ih2, b_hh2, H02,
                            t_blk=8, b_tile=8, param_dtype=jnp.float32)
    jax.block_until_ready((out3, hn3))
    assert jnp.allclose(out3, ref_out3, atol=1e-4, rtol=1e-4)
    assert jnp.allclose(hn3, ref_hn3, atol=1e-4, rtol=1e-4)

    print("KERNEL_OK")
</pallas_src>

<mosaic_0001>
module attributes {stable_mosaic.version = 11 : i64} {
  func.func @_rnn_recurrence_kernel(%arg0: i32, %arg1: i32, %arg2: memref<1x8x8x128xf32, #tpu.memory_space<vmem>>, %arg3: memref<128x128xf32, #tpu.memory_space<vmem>>, %arg4: memref<8x128xf32, #tpu.memory_space<vmem>>, %arg5: memref<1x8x8x128xf32, #tpu.memory_space<vmem>>, %arg6: memref<8x128xf32, #tpu.memory_space<vmem>>) attributes {dimension_semantics = [#tpu.dimension_semantics<parallel>, #tpu.dimension_semantics<arbitrary>], iteration_bounds = array<i64: 1, 1>, scalar_prefetch = 0 : i64, scratch_operands = 1 : i64, tpu.core_type = #tpu.core_type<tc>, window_params = [{transform_indices = @transform_0, window_bounds = array<i64: 1, 8, 8, 128>}, {pipeline_mode = #tpu.pipeline_mode<synchronous>, transform_indices = @transform_1, window_bounds = array<i64: 128, 128>}, {pipeline_mode = #tpu.pipeline_mode<synchronous>, transform_indices = @transform_2, window_bounds = array<i64: 8, 128>}, {transform_indices = @transform_3, window_bounds = array<i64: 1, 8, 8, 128>}]} {
    %c0_i32 = arith.constant 0 : i32
    %0 = arith.cmpi eq, %arg1, %c0_i32 : i32
    %1 = arith.extui %0 : i1 to i32
    %c0_i32_0 = arith.constant 0 : i32
    %2 = arith.cmpi ne, %1, %c0_i32_0 : i32
    scf.if %2 {
      %c0_62 = arith.constant 0 : index
      %c0_63 = arith.constant 0 : index
      %86 = vector.load %arg4[%c0_62, %c0_63] : memref<8x128xf32, #tpu.memory_space<vmem>>, vector<8x128xf32>
      %c0_64 = arith.constant 0 : index
      %c0_65 = arith.constant 0 : index
      %87 = vector.load %arg6[%c0_64, %c0_65] : memref<8x128xf32, #tpu.memory_space<vmem>>, vector<8x128xf32>
      tpu.vector_store %arg6[%c0_64, %c0_65], %86 {strides = array<i32>} : memref<8x128xf32, #tpu.memory_space<vmem>>, vector<8x128xf32>,
    } else {
    }
    %c0 = arith.constant 0 : index
    %c0_1 = arith.constant 0 : index
    %3 = vector.load %arg3[%c0, %c0_1] : memref<128x128xf32, #tpu.memory_space<vmem>>, vector<128x128xf32>
    %c0_2 = arith.constant 0 : index
    %c0_3 = arith.constant 0 : index
    %4 = vector.load %arg6[%c0_2, %c0_3] : memref<8x128xf32, #tpu.memory_space<vmem>>, vector<8x128xf32>
    %c0_i32_4 = arith.constant 0 : i32
    %c0_5 = arith.constant 0 : index
    %5 = arith.index_cast %c0_i32_4 : i32 to index
    %c0_6 = arith.constant 0 : index
    %c0_7 = arith.constant 0 : index
    %6 = vector.load %arg2[%c0_5, %5, %c0_6, %c0_7] : memref<1x8x8x128xf32, #tpu.memory_space<vmem>>, vector<1x1x8x128xf32>
    %7 = vector.shape_cast %6 : vector<1x1x8x128xf32> to vector<8x128xf32>
    %cst = arith.constant dense<0.000000e+00> : vector<8x128xf32>
    %8 = tpu.matmul %4, %3, %cst {dimension_numbers = #tpu.dot_dimension_numbers<[1], [0], [0], [1], [0, 0, 1, 1], [], []>} : vector<8x128xf32>, vector<128x128xf32>, vector<8x128xf32> -> vector<8x128xf32>
    %9 = arith.addf %7, %8 : vector<8x128xf32>
    %10 = math.tanh %9 : vector<8x128xf32>
    %c0_8 = arith.constant 0 : index
    %11 = arith.index_cast %c0_i32_4 : i32 to index
    %c0_9 = arith.constant 0 : index
    %c0_10 = arith.constant 0 : index
    %12 = vector.load %arg5[%c0_8, %11, %c0_9, %c0_10] : memref<1x8x8x128xf32, #tpu.memory_space<vmem>>, vector<1x1x8x128xf32>
    %13 = vector.shape_cast %12 : vector<1x1x8x128xf32> to vector<8x128xf32>
    %14 = vector.shape_cast %10 : vector<8x128xf32> to vector<1x1x8x128xf32>
    tpu.vector_store %arg5[%c0_8, %11, %c0_9, %c0_10], %14 {strides = array<i32>} : memref<1x8x8x128xf32, #tpu.memory_space<vmem>>, vector<1x1x8x128xf32>,
    %c1_i32 = arith.constant 1 : i32
    %c0_11 = arith.constant 0 : index
    %15 = arith.index_cast %c1_i32 : i32 to index
    %c0_12 = arith.constant 0 : index
    %c0_13 = arith.constant 0 : index
    %16 = vector.load %arg2[%c0_11, %15, %c0_12, %c0_13] : memref<1x8x8x128xf32, #tpu.memory_space<vmem>>, vector<1x1x8x128xf32>
    %17 = vector.shape_cast %16 : vector<1x1x8x128xf32> to vector<8x128xf32>
    %cst_14 = arith.constant dense<0.000000e+00> : vector<8x128xf32>
    %18 = tpu.matmul %10, %3, %cst_14 {dimension_numbers = #tpu.dot_dimension_numbers<[1], [0], [0], [1], [0, 0, 1, 1], [], []>} : vector<8x128xf32>, vector<128x128xf32>, vector<8x128xf32> -> vector<8x128xf32>
    %19 = arith.addf %17, %18 : vector<8x128xf32>
    %20 = math.tanh %19 : vector<8x128xf32>
    %c0_15 = arith.constant 0 : index
    %21 = arith.index_cast %c1_i32 : i32 to index
    %c0_16 = arith.constant 0 : index
    %c0_17 = arith.constant 0 : index
    %22 = vector.load %arg5[%c0_15, %21, %c0_16, %c0_17] : memref<1x8x8x128xf32, #tpu.memory_space<vmem>>, vector<1x1x8x128xf32>
    %23 = vector.shape_cast %22 : vector<1x1x8x128xf32> to vector<8x128xf32>
    %24 = vector.shape_cast %20 : vector<8x128xf32> to vector<1x1x8x128xf32>
    tpu.vector_store %arg5[%c0_15, %21, %c0_16, %c0_17], %24 {strides = array<i32>} : memref<1x8x8x128xf32, #tpu.memory_space<vmem>>, vector<1x1x8x128xf32>,
    %c2_i32 = arith.constant 2 : i32
    %c0_18 = arith.constant 0 : index
    %25 = arith.index_cast %c2_i32 : i32 to index
    %c0_19 = arith.constant 0 : index
    %c0_20 = arith.constant 0 : index
    %26 = vector.load %arg2[%c0_18, %25, %c0_19, %c0_20] : memref<1x8x8x128xf32, #tpu.memory_space<vmem>>, vector<1x1x8x128xf32>
    %27 = vector.shape_cast %26 : vector<1x1x8x128xf32> to vector<8x128xf32>
    %cst_21 = arith.constant dense<0.000000e+00> : vector<8x128xf32>
    %28 = tpu.matmul %20, %3, %cst_21 {dimension_numbers = #tpu.dot_dimension_numbers<[1], [0], [0], [1], [0, 0, 1, 1], [], []>} : vector<8x128xf32>, vector<128x128xf32>, vector<8x128xf32> -> vector<8x128xf32>
    %29 = arith.addf %27, %28 : vector<8x128xf32>
    %30 = math.tanh %29 : vector<8x128xf32>
    %c0_22 = arith.constant 0 : index
    %31 = arith.index_cast %c2_i32 : i32 to index
    %c0_23 = arith.constant 0 : index
    %c0_24 = arith.constant 0 : index
    %32 = vector.load %arg5[%c0_22, %31, %c0_23, %c0_24] : memref<1x8x8x128xf32, #tpu.memory_space<vmem>>, vector<1x1x8x128xf32>
    %33 = vector.shape_cast %32 : vector<1x1x8x128xf32> to vector<8x128xf32>
    %34 = vector.shape_cast %30 : vector<8x128xf32> to vector<1x1x8x128xf32>
    tpu.vector_store %arg5[%c0_22, %31, %c0_23, %c0_24], %34 {strides = array<i32>} : memref<1x8x8x128xf32, #tpu.memory_space<vmem>>, vector<1x1x8x128xf32>,
    %c3_i32 = arith.constant 3 : i32
    %c0_25 = arith.constant 0 : index
    %35 = arith.index_cast %c3_i32 : i32 to index
    %c0_26 = arith.constant 0 : index
    %c0_27 = arith.constant 0 : index
    %36 = vector.load %arg2[%c0_25, %35, %c0_26, %c0_27] : memref<1x8x8x128xf32, #tpu.memory_space<vmem>>, vector<1x1x8x128xf32>
    %37 = vector.shape_cast %36 : vector<1x1x8x128xf32> to vector<8x128xf32>
    %cst_28 = arith.constant dense<0.000000e+00> : vector<8x128xf32>
    %38 = tpu.matmul %30, %3, %cst_28 {dimension_numbers = #tpu.dot_dimension_numbers<[1], [0], [0], [1], [0, 0, 1, 1], [], []>} : vector<8x128xf32>, vector<128x128xf32>, vector<8x128xf32> -> vector<8x128xf32>
    %39 = arith.addf %37, %38 : vector<8x128xf32>
    %40 = math.tanh %39 : vector<8x128xf32>
    %c0_29 = arith.constant 0 : index
    %41 = arith.index_cast %c3_i32 : i32 to index
    %c0_30 = arith.constant 0 : index
    %c0_31 = arith.constant 0 : index
    %42 = vector.load %arg5[%c0_29, %41, %c0_30, %c0_31] : memref<1x8x8x128xf32, #tpu.memory_space<vmem>>, vector<1x1x8x128xf32>
    %43 = vector.shape_cast %42 : vector<1x1x8x128xf32> to vector<8x128xf32>
    %44 = vector.shape_cast %40 : vector<8x128xf32> to vector<1x1x8x128xf32>
    tpu.vector_store %arg5[%c0_29, %41, %c0_30, %c0_31], %44 {strides = array<i32>} : memref<1x8x8x128xf32, #tpu.memory_space<vmem>>, vector<1x1x8x128xf32>,
    %c4_i32 = arith.constant 4 : i32
    %c0_32 = arith.constant 0 : index
    %45 = arith.index_cast %c4_i32 : i32 to index
    %c0_33 = arith.constant 0 : index
    %c0_34 = arith.constant 0 : index
    %46 = vector.load %arg2[%c0_32, %45, %c0_33, %c0_34] : memref<1x8x8x128xf32, #tpu.memory_space<vmem>>, vector<1x1x8x128xf32>
    %47 = vector.shape_cast %46 : vector<1x1x8x128xf32> to vector<8x128xf32>
    %cst_35 = arith.constant dense<0.000000e+00> : vector<8x128xf32>
    %48 = tpu.matmul %40, %3, %cst_35 {dimension_numbers = #tpu.dot_dimension_numbers<[1], [0], [0], [1], [0, 0, 1, 1], [], []>} : vector<8x128xf32>, vector<128x128xf32>, vector<8x128xf32> -> vector<8x128xf32>
    %49 = arith.addf %47, %48 : vector<8x128xf32>
    %50 = math.tanh %49 : vector<8x128xf32>
    %c0_36 = arith.constant 0 : index
    %51 = arith.index_cast %c4_i32 : i32 to index
    %c0_37 = arith.constant 0 : index
    %c0_38 = arith.constant 0 : index
    %52 = vector.load %arg5[%c0_36, %51, %c0_37, %c0_38] : memref<1x8x8x128xf32, #tpu.memory_space<vmem>>, vector<1x1x8x128xf32>
    %53 = vector.shape_cast %52 : vector<1x1x8x128xf32> to vector<8x128xf32>
    %54 = vector.shape_cast %50 : vector<8x128xf32> to vector<1x1x8x128xf32>
    tpu.vector_store %arg5[%c0_36, %51, %c0_37, %c0_38], %54 {strides = array<i32>} : memref<1x8x8x128xf32, #tpu.memory_space<vmem>>, vector<1x1x8x128xf32>,
    %c5_i32 = arith.constant 5 : i32
    %c0_39 = arith.constant 0 : index
    %55 = arith.index_cast %c5_i32 : i32 to index
    %c0_40 = arith.constant 0 : index
    %c0_41 = arith.constant 0 : index
    %56 = vector.load %arg2[%c0_39, %55, %c0_40, %c0_41] : memref<1x8x8x128xf32, #tpu.memory_space<vmem>>, vector<1x1x8x128xf32>
    %57 = vector.shape_cast %56 : vector<1x1x8x128xf32> to vector<8x128xf32>
    %cst_42 = arith.constant dense<0.000000e+00> : vector<8x128xf32>
    %58 = tpu.matmul %50, %3, %cst_42 {dimension_numbers = #tpu.dot_dimension_numbers<[1], [0], [0], [1], [0, 0, 1, 1], [], []>} : vector<8x128xf32>, vector<128x128xf32>, vector<8x128xf32> -> vector<8x128xf32>
    %59 = arith.addf %57, %58 : vector<8x128xf32>
    %60 = math.tanh %59 : vector<8x128xf32>
    %c0_43 = arith.constant 0 : index
    %61 = arith.index_cast %c5_i32 : i32 to index
    %c0_44 = arith.constant 0 : index
    %c0_45 = arith.constant 0 : index
    %62 = vector.load %arg5[%c0_43, %61, %c0_44, %c0_45] : memref<1x8x8x128xf32, #tpu.memory_space<vmem>>, vector<1x1x8x128xf32>
    %63 = vector.shape_cast %62 : vector<1x1x8x128xf32> to vector<8x128xf32>
    %64 = vector.shape_cast %60 : vector<8x128xf32> to vector<1x1x8x128xf32>
    tpu.vector_store %arg5[%c0_43, %61, %c0_44, %c0_45], %64 {strides = array<i32>} : memref<1x8x8x128xf32, #tpu.memory_space<vmem>>, vector<1x1x8x128xf32>,
    %c6_i32 = arith.constant 6 : i32
    %c0_46 = arith.constant 0 : index
    %65 = arith.index_cast %c6_i32 : i32 to index
    %c0_47 = arith.constant 0 : index
    %c0_48 = arith.constant 0 : index
    %66 = vector.load %arg2[%c0_46, %65, %c0_47, %c0_48] : memref<1x8x8x128xf32, #tpu.memory_space<vmem>>, vector<1x1x8x128xf32>
    %67 = vector.shape_cast %66 : vector<1x1x8x128xf32> to vector<8x128xf32>
    %cst_49 = arith.constant dense<0.000000e+00> : vector<8x128xf32>
    %68 = tpu.matmul %60, %3, %cst_49 {dimension_numbers = #tpu.dot_dimension_numbers<[1], [0], [0], [1], [0, 0, 1, 1], [], []>} : vector<8x128xf32>, vector<128x128xf32>, vector<8x128xf32> -> vector<8x128xf32>
    %69 = arith.addf %67, %68 : vector<8x128xf32>
    %70 = math.tanh %69 : vector<8x128xf32>
    %c0_50 = arith.constant 0 : index
    %71 = arith.index_cast %c6_i32 : i32 to index
    %c0_51 = arith.constant 0 : index
    %c0_52 = arith.constant 0 : index
    %72 = vector.load %arg5[%c0_50, %71, %c0_51, %c0_52] : memref<1x8x8x128xf32, #tpu.memory_space<vmem>>, vector<1x1x8x128xf32>
    %73 = vector.shape_cast %72 : vector<1x1x8x128xf32> to vector<8x128xf32>
    %74 = vector.shape_cast %70 : vector<8x128xf32> to vector<1x1x8x128xf32>
    tpu.vector_store %arg5[%c0_50, %71, %c0_51, %c0_52], %74 {strides = array<i32>} : memref<1x8x8x128xf32, #tpu.memory_space<vmem>>, vector<1x1x8x128xf32>,
    %c7_i32 = arith.constant 7 : i32
    %c0_53 = arith.constant 0 : index
    %75 = arith.index_cast %c7_i32 : i32 to index
    %c0_54 = arith.constant 0 : index
    %c0_55 = arith.constant 0 : index
    %76 = vector.load %arg2[%c0_53, %75, %c0_54, %c0_55] : memref<1x8x8x128xf32, #tpu.memory_space<vmem>>, vector<1x1x8x128xf32>
    %77 = vector.shape_cast %76 : vector<1x1x8x128xf32> to vector<8x128xf32>
    %cst_56 = arith.constant dense<0.000000e+00> : vector<8x128xf32>
    %78 = tpu.matmul %70, %3, %cst_56 {dimension_numbers = #tpu.dot_dimension_numbers<[1], [0], [0], [1], [0, 0, 1, 1], [], []>} : vector<8x128xf32>, vector<128x128xf32>, vector<8x128xf32> -> vector<8x128xf32>
    %79 = arith.addf %77, %78 : vector<8x128xf32>
    %80 = math.tanh %79 : vector<8x128xf32>
    %c0_57 = arith.constant 0 : index
    %81 = arith.index_cast %c7_i32 : i32 to index
    %c0_58 = arith.constant 0 : index
    %c0_59 = arith.constant 0 : index
    %82 = vector.load %arg5[%c0_57, %81, %c0_58, %c0_59] : memref<1x8x8x128xf32, #tpu.memory_space<vmem>>, vector<1x1x8x128xf32>
    %83 = vector.shape_cast %82 : vector<1x1x8x128xf32> to vector<8x128xf32>
    %84 = vector.shape_cast %80 : vector<8x128xf32> to vector<1x1x8x128xf32>
    tpu.vector_store %arg5[%c0_57, %81, %c0_58, %c0_59], %84 {strides = array<i32>} : memref<1x8x8x128xf32, #tpu.memory_space<vmem>>, vector<1x1x8x128xf32>,
    %c8_i32 = arith.constant 8 : i32
    %c0_60 = arith.constant 0 : index
    %c0_61 = arith.constant 0 : index
    %85 = vector.load %arg6[%c0_60, %c0_61] : memref<8x128xf32, #tpu.memory_space<vmem>>, vector<8x128xf32>
    tpu.vector_store %arg6[%c0_60, %c0_61], %80 {strides = array<i32>} : memref<8x128xf32, #tpu.memory_space<vmem>>, vector<8x128xf32>,
    return
  }
  func.func @transform_0(%arg0: i32, %arg1: i32) -> (i32, i32, i32, i32) {
    %c0_i32 = arith.constant 0 : i32
    %c0_i32_0 = arith.constant 0 : i32
    %c0_i32_1 = arith.constant 0 : i32
    return %arg0, %arg1, %c0_i32, %c0_i32_0 : i32, i32, i32, i32
  }
  func.func @transform_1(%arg0: i32, %arg1: i32) -> (i32, i32) {
    %c0_i32 = arith.constant 0 : i32
    %c0_i32_0 = arith.constant 0 : i32
    %c0_i32_1 = arith.constant 0 : i32
    return %c0_i32, %c0_i32_0 : i32, i32
  }
  func.func @transform_2(%arg0: i32, %arg1: i32) -> (i32, i32) {
    %c0_i32 = arith.constant 0 : i32
    %c0_i32_0 = arith.constant 0 : i32
    return %arg0, %c0_i32 : i32, i32
  }
  func.func @transform_3(%arg0: i32, %arg1: i32) -> (i32, i32, i32, i32) {
    %c0_i32 = arith.constant 0 : i32
    %c0_i32_0 = arith.constant 0 : i32
    %c0_i32_1 = arith.constant 0 : i32
    return %arg0, %arg1, %c0_i32, %c0_i32_0 : i32, i32, i32, i32
  }
}

</mosaic_0001>

<llo_original>
// kernel: tpu_custom_call.1
$region0: #{tpu_custom_call.1}
  #allocation0 [shape = 'u32[]', space=smem, size = 0x4, offset = 0x4, fixed_abs, tag = 'smem constant byte address 0x4 - core index']
  #allocation1 [shape = 'u32[144,128]{1,0:T(1,128)}', space=vmem, size = 0x12000, scoped, tag = 'internal scratch']
  #allocation2 [shape = 'f32[8,128]{1,0:T(8,128)}', space=vmem, size = 0x1000, scoped, tag = 'scratch operand']
  %s0 = inlined_call_operand.hbm [shape: f32[1,8,8,128], index: 0, kind: input, shape index: {}]
  %s1 = inlined_call_operand.hbm [shape: f32[128,128], index: 1, kind: input, shape index: {}]
  %s2 = inlined_call_operand.hbm [shape: f32[8,128], index: 2, kind: input, shape index: {}]
  %s3 = inlined_call_operand.hbm [shape: f32[1,8,8,128], index: 3, kind: output, shape index: {}]
  %s4 = sld [smem:[#allocation0]]
  $region38: #{tpu_custom_call.1} parent=0
    _
  %s6 = ssub.s32 1, %s4
  %s7 = scalar_select 0, %s6, %s4
  $region1: #{tpu_custom_call.1} parent=0
    #allocation3 [shape = 'u8[32768]{0}', space=vmem, size = 0x8000, scoped, tag = 'input window, operand 0, single buffered']
    #allocation4 [shape = 's32[1]{0}', space=sflag, size = 0x4, scoped, tag = 'scoped memory for tpu_custom_call.1']
    #allocation5 [shape = 's32[1]{0}', space=sflag, size = 0x4, scoped, tag = 'scoped memory for tpu_custom_call.1']
    #allocation6 [shape = 'u8[65536]{0}', space=vmem, size = 0x10000, scoped, tag = 'input window, operand 1, single buffered']
    #allocation7 [shape = 's32[1]{0}', space=sflag, size = 0x4, scoped, tag = 'scoped memory for tpu_custom_call.1']
    #allocation8 [shape = 'u8[4096]{0}', space=vmem, size = 0x1000, scoped, tag = 'input window, operand 2, single buffered']
    #allocation9 [shape = 'u8[32768]{0}', space=vmem, size = 0x8000, scoped, tag = 'output window, operand 0, single buffered']
    %8 = vsyncpa [#allocation4], 0
    %9 = vsyncpa [#allocation7], 0
    %10 = vsyncpa [#allocation5], 0
    // Predicated region
    $region2: #{tpu_custom_call.1} parent=1 // pred_check
      _
    $region3: #{tpu_custom_call.1} parent=1 // pred_check_branch
      %12 = sbr.rel (0) target = $region5
    $region4: #{tpu_custom_call.1} parent=1 // pred_region
      %s14 = ssub.s32 1024, 1024
      %15 = vsyncadd [#allocation4], %s14
      %s16 = sshll.u32 [#allocation3], 4
      %s17 = int_to_ptr.vmem [resolvable:$true] %s16
      %22 = dma.hbm_to_vmem [thread:$0]  %s0, 1024, %s17, [#allocation4], 128, 128, 8
    $region5: #{tpu_custom_call.1} parent=1 // pred_fallthru
      _
    // Predicated region
    $region6: #{tpu_custom_call.1} parent=1 // pred_check
      _
    $region7: #{tpu_custom_call.1} parent=1 // pred_check_branch
      %24 = sbr.rel (0) target = $region9
    $region8: #{tpu_custom_call.1} parent=1 // pred_region
      %s26 = ssub.s32 2048, 2048
      %27 = vsyncadd [#allocation7], %s26
      %s28 = sshll.u32 [#allocation6], 4
      %s29 = int_to_ptr.vmem [resolvable:$true] %s28
      %34 = dma.hbm_to_vmem [thread:$0]  %s1, 2048, %s29, [#allocation7], 128, 128, 8
    $region9: #{tpu_custom_call.1} parent=1 // pred_fallthru
      _
    // Predicated region
    $region10: #{tpu_custom_call.1} parent=1 // pred_check
      _
    $region11: #{tpu_custom_call.1} parent=1 // pred_check_branch
      %36 = sbr.rel (0) target = $region13
    $region12: #{tpu_custom_call.1} parent=1 // pred_region
      %s38 = ssub.s32 128, 128
      %39 = vsyncadd [#allocation7], %s38
      %s41 = sshll.u32 [#allocation8], 4
      %s42 = int_to_ptr.vmem [resolvable:$true] %s41
      %44 = dma.hbm_to_vmem [thread:$0]  %s2, 128, %s42, [#allocation7]
    $region13: #{tpu_custom_call.1} parent=1 // pred_fallthru
      _
    // Predicated region
    $region14: #{tpu_custom_call.1} parent=1 // pred_check
      _
    $region15: #{tpu_custom_call.1} parent=1 // pred_check_branch
      %46 = sbr.rel (0) target = $region17
    $region16: #{tpu_custom_call.1} parent=1 // pred_region
      %47 = dma.done [#allocation4], 1024
    $region17: #{tpu_custom_call.1} parent=1 // pred_fallthru
      _
    // Predicated region
    $region18: #{tpu_custom_call.1} parent=1 // pred_check
      _
    $region19: #{tpu_custom_call.1} parent=1 // pred_check_branch
      %49 = sbr.rel (0) target = $region21
    $region20: #{tpu_custom_call.1} parent=1 // pred_region
      %50 = dma.done [#allocation7], 2048
    $region21: #{tpu_custom_call.1} parent=1 // pred_fallthru
      _
    // Predicated region
    $region22: #{tpu_custom_call.1} parent=1 // pred_check
      _
    $region23: #{tpu_custom_call.1} parent=1 // pred_check_branch
      %52 = sbr.rel (0) target = $region25
    $region24: #{tpu_custom_call.1} parent=1 // pred_region
      %53 = dma.done [#allocation7], 128
    $region25: #{tpu_custom_call.1} parent=1 // pred_fallthru
      _
    %p54 = scmp.eq.s32.totalorder 0, 0
    // Predicated region
    $region26: #{tpu_custom_call.1} parent=1 // pred_check
      %p55 = pneg %p54
    $region27: #{tpu_custom_call.1} parent=1 // pred_check_branch
      %57 = sbr.rel (%p55) target = $region29
    $region28: #{tpu_custom_call.1} parent=1 // pred_region
      %v58 = vld [vmem:[#allocation8] sm:$0xff]
      %59 = vst [vmem:[#allocation2] sm:$0xff] %v58
    $region29: #{tpu_custom_call.1} parent=1 // pred_fallthru
      _
    %v60 = vld [vmem:[#allocation6] sm:$0xff]
    %v61 = vld [vmem:[#allocation6 + $0x8] sm:$0xff]
    %v62 = vld [vmem:[#allocation6 + $0x10] sm:$0xff]
    %v63 = vld [vmem:[#allocation6 + $0x18] sm:$0xff]
    %v64 = vld [vmem:[#allocation6 + $0x20] sm:$0xff]
    %v65 = vld [vmem:[#allocation6 + $0x28] sm:$0xff]
    %v66 = vld [vmem:[#allocation6 + $0x30] sm:$0xff]
    %v67 = vld [vmem:[#allocation6 + $0x38] sm:$0xff]
    %v68 = vld [vmem:[#allocation6 + $0x40] sm:$0xff]
    %v69 = vld [vmem:[#allocation6 + $0x48] sm:$0xff]
    %v70 = vld [vmem:[#allocation6 + $0x50] sm:$0xff]
    %v71 = vld [vmem:[#allocation6 + $0x58] sm:$0xff]
    %v72 = vld [vmem:[#allocation6 + $0x60] sm:$0xff]
    %v73 = vld [vmem:[#allocation6 + $0x68] sm:$0xff]
    %v74 = vld [vmem:[#allocation6 + $0x70] sm:$0xff]
    %v75 = vld [vmem:[#allocation6 + $0x78] sm:$0xff]
    %v76 = vld [vmem:[#allocation2] sm:$0xff]
    %v77 = vld [vmem:[#allocation3] sm:$0xff]
    %78 = vmatprep.subr.mxu0 0.0
    %79 = vmatpush1.msra.mxu0 %v60
    %80 = vmatprep.subr.mxu0 0.0
    %81 = vmatpush1.msra.mxu0 %v61
    %82 = vmatprep.subr.mxu0 0.0
    %83 = vmatpush1.msra.mxu0 %v62
    %84 = vmatprep.subr.mxu0 0.0
    %85 = vmatpush1.msra.mxu0 %v63
    %86 = vmatprep.subr.mxu0 0.0
    %87 = vmatpush1.msra.mxu0 %v64
    %88 = vmatprep.subr.mxu0 0.0
    %89 = vmatpush1.msra.mxu0 %v65
    %90 = vmatprep.subr.mxu0 0.0
    %91 = vmatpush1.msra.mxu0 %v66
    %92 = vmatprep.subr.mxu0 0.0
    %93 = vmatpush1.msra.mxu0 %v67
    %94 = vmatprep.subr.mxu0 0.0
    %95 = vmatpush1.msra.mxu0 %v68
    %96 = vmatprep.subr.mxu0 0.0
    %97 = vmatpush1.msra.mxu0 %v69
    %98 = vmatprep.subr.mxu0 0.0
    %99 = vmatpush1.msra.mxu0 %v70
    %100 = vmatprep.subr.mxu0 0.0
    %101 = vmatpush1.msra.mxu0 %v71
    %102 = vmatprep.subr.mxu0 0.0
    %103 = vmatpush1.msra.mxu0 %v72
    %104 = vmatprep.subr.mxu0 0.0
    %105 = vmatpush1.msra.mxu0 %v73
    %106 = vmatprep.subr.mxu0 0.0
    %107 = vmatpush1.msra.mxu0 %v74
    %108 = vmatprep.subr.mxu0 0.0
    %109 = vmatpush1.msra.mxu0 %v75
    %110 = vmatprep.subr.mxu0 0.0
    %111 = vmatpush1.msra.mxu0 0.0
    %112 = vmatprep.subr.mxu0 0.0
    %113 = vmatpush1.msra.mxu0 0.0
    %114 = vmatprep.subr.mxu0 0.0
    %115 = vmatpush1.msra.mxu0 0.0
    %116 = vmatprep.subr.mxu0 0.0
    %117 = vmatpush1.msra.mxu0 0.0
    %118 = vmatprep.subr.mxu0 0.0
    %119 = vmatpush1.msra.mxu0 0.0
    %120 = vmatprep.subr.mxu0 0.0
    %121 = vmatpush1.msra.mxu0 0.0
    %122 = vmatprep.subr.mxu0 0.0
    %123 = vmatpush1.msra.mxu0 0.0
    %124 = vmatprep.subr.mxu0 0.0
    %125 = vmatpush1.msra.mxu0 0.0
    %126 = vmatprep.subr.mxu0 0.0
    %127 = vmatpush1.msra.mxu0 0.0
    %128 = vmatprep.subr.mxu0 0.0
    %129 = vmatpush1.msra.mxu0 0.0
    %130 = vmatprep.subr.mxu0 0.0
    %131 = vmatpush1.msra.mxu0 0.0
    %132 = vmatprep.subr.mxu0 0.0
    %133 = vmatpush1.msra.mxu0 0.0
    %134 = vmatprep.subr.mxu0 0.0
    %135 = vmatpush1.msra.mxu0 0.0
    %136 = vmatprep.subr.mxu0 0.0
    %137 = vmatpush1.msra.mxu0 0.0
    %138 = vmatprep.subr.mxu0 0.0
    %139 = vmatpush1.msra.mxu0 0.0
    %140 = vmatprep.subr.mxu0 0.0
    %141 = vmatpush1.msra.mxu0 0.0
    %142 = vmatprep.mubr.f32.mxu0 0.0
    %143 = vmatmul.mubr.f32.gmra.mrb[0].mxu0 %v76
    %v144 = vpop.f32.mrb[0].mxu0
    %v145 = vadd.f32 0.0, %v144
    %v146 = vpop.f32.mrb[0].mxu0
    %147 = vdwg.mxu0
    %v148 = vadd.f32 %v77, %v145
    %v149 = vtanh.pop %v148
    %150 = vst [vmem:[#allocation9] sm:$0xff] %v149
    %s151 = scalar_lea.vmem [#allocation3], 8
    %v152 = vld [vmem:[%s151] sm:$0xff]
    %153 = vmatprep.subr.mxu0 0.0
    %154 = vmatpush1.msra.mxu0 %v60
    %155 = vmatprep.subr.mxu0 0.0
    %156 = vmatpush1.msra.mxu0 %v61
    %157 = vmatprep.subr.mxu0 0.0
    %158 = vmatpush1.msra.mxu0 %v62
    %159 = vmatprep.subr.mxu0 0.0
    %160 = vmatpush1.msra.mxu0 %v63
    %161 = vmatprep.subr.mxu0 0.0
    %162 = vmatpush1.msra.mxu0 %v64
    %163 = vmatprep.subr.mxu0 0.0
    %164 = vmatpush1.msra.mxu0 %v65
    %165 = vmatprep.subr.mxu0 0.0
    %166 = vmatpush1.msra.mxu0 %v66
    %167 = vmatprep.subr.mxu0 0.0
    %168 = vmatpush1.msra.mxu0 %v67
    %169 = vmatprep.subr.mxu0 0.0
    %170 = vmatpush1.msra.mxu0 %v68
    %171 = vmatprep.subr.mxu0 0.0
    %172 = vmatpush1.msra.mxu0 %v69
    %173 = vmatprep.subr.mxu0 0.0
    %174 = vmatpush1.msra.mxu0 %v70
    %175 = vmatprep.subr.mxu0 0.0
    %176 = vmatpush1.msra.mxu0 %v71
    %177 = vmatprep.subr.mxu0 0.0
    %178 = vmatpush1.msra.mxu0 %v72
    %179 = vmatprep.subr.mxu0 0.0
    %180 = vmatpush1.msra.mxu0 %v73
    %181 = vmatprep.subr.mxu0 0.0
    %182 = vmatpush1.msra.mxu0 %v74
    %183 = vmatprep.subr.mxu0 0.0
    %184 = vmatpush1.msra.mxu0 %v75
    %185 = vmatprep.subr.mxu0 0.0
    %186 = vmatpush1.msra.mxu0 0.0
    %187 = vmatprep.subr.mxu0 0.0
    %188 = vmatpush1.msra.mxu0 0.0
    %189 = vmatprep.subr.mxu0 0.0
    %190 = vmatpush1.msra.mxu0 0.0
    %191 = vmatprep.subr.mxu0 0.0
    %192 = vmatpush1.msra.mxu0 0.0
    %193 = vmatprep.subr.mxu0 0.0
    %194 = vmatpush1.msra.mxu0 0.0
    %195 = vmatprep.subr.mxu0 0.0
    %196 = vmatpush1.msra.mxu0 0.0
    %197 = vmatprep.subr.mxu0 0.0
    %198 = vmatpush1.msra.mxu0 0.0
    %199 = vmatprep.subr.mxu0 0.0
    %200 = vmatpush1.msra.mxu0 0.0
    %201 = vmatprep.subr.mxu0 0.0
    %202 = vmatpush1.msra.mxu0 0.0
    %203 = vmatprep.subr.mxu0 0.0
    %204 = vmatpush1.msra.mxu0 0.0
    %205 = vmatprep.subr.mxu0 0.0
    %206 = vmatpush1.msra.mxu0 0.0
    %207 = vmatprep.subr.mxu0 0.0
    %208 = vmatpush1.msra.mxu0 0.0
    %209 = vmatprep.subr.mxu0 0.0
    %210 = vmatpush1.msra.mxu0 0.0
    %211 = vmatprep.subr.mxu0 0.0
    %212 = vmatpush1.msra.mxu0 0.0
    %213 = vmatprep.subr.mxu0 0.0
    %214 = vmatpush1.msra.mxu0 0.0
    %215 = vmatprep.subr.mxu0 0.0
    %216 = vmatpush1.msra.mxu0 0.0
    %217 = vmatprep.mubr.f32.mxu0 0.0
    %218 = vmatmul.mubr.f32.gmra.mrb[0].mxu0 %v149
    %v219 = vpop.f32.mrb[0].mxu0
    %v220 = vadd.f32 0.0, %v219
    %v221 = vpop.f32.mrb[0].mxu0
    %222 = vdwg.mxu0
    %v223 = vadd.f32 %v152, %v220
    %v224 = vtanh.pop %v223
    %s225 = scalar_lea.vmem [#allocation9], 8
    %226 = vst [vmem:[%s225] sm:$0xff] %v224
    %s227 = scalar_lea.vmem [#allocation3], 16
    %v228 = vld [vmem:[%s227] sm:$0xff]
    %229 = vmatprep.subr.mxu0 0.0
    %230 = vmatpush1.msra.mxu0 %v60
    %231 = vmatprep.subr.mxu0 0.0
    %232 = vmatpush1.msra.mxu0 %v61
    %233 = vmatprep.subr.mxu0 0.0
    %234 = vmatpush1.msra.mxu0 %v62
    %235 = vmatprep.subr.mxu0 0.0
    %236 = vmatpush1.msra.mxu0 %v63
    %237 = vmatprep.subr.mxu0 0.0
    %238 = vmatpush1.msra.mxu0 %v64
    %239 = vmatprep.subr.mxu0 0.0
    %240 = vmatpush1.msra.mxu0 %v65
    %241 = vmatprep.subr.mxu0 0.0
    %242 = vmatpush1.msra.mxu0 %v66
    %243 = vmatprep.subr.mxu0 0.0
    %244 = vmatpush1.msra.mxu0 %v67
    %245 = vmatprep.subr.mxu0 0.0
    %246 = vmatpush1.msra.mxu0 %v68
    %247 = vmatprep.subr.mxu0 0.0
    %248 = vmatpush1.msra.mxu0 %v69
    %249 = vmatprep.subr.mxu0 0.0
    %250 = vmatpush1.msra.mxu0 %v70
    %251 = vmatprep.subr.mxu0 0.0
    %252 = vmatpush1.msra.mxu0 %v71
    %253 = vmatprep.subr.mxu0 0.0
    %254 = vmatpush1.msra.mxu0 %v72
    %255 = vmatprep.subr.mxu0 0.0
    %256 = vmatpush1.msra.mxu0 %v73
    %257 = vmatprep.subr.mxu0 0.0
    %258 = vmatpush1.msra.mxu0 %v74
    %259 = vmatprep.subr.mxu0 0.0
    %260 = vmatpush1.msra.mxu0 %v75
    %261 = vmatprep.subr.mxu0 0.0
    %262 = vmatpush1.msra.mxu0 0.0
    %263 = vmatprep.subr.mxu0 0.0
    %264 = vmatpush1.msra.mxu0 0.0
    %265 = vmatprep.subr.mxu0 0.0
    %266 = vmatpush1.msra.mxu0 0.0
    %267 = vmatprep.subr.mxu0 0.0
    %268 = vmatpush1.msra.mxu0 0.0
    %269 = vmatprep.subr.mxu0 0.0
    %270 = vmatpush1.msra.mxu0 0.0
    %271 = vmatprep.subr.mxu0 0.0
    %272 = vmatpush1.msra.mxu0 0.0
    %273 = vmatprep.subr.mxu0 0.0
    %274 = vmatpush1.msra.mxu0 0.0
    %275 = vmatprep.subr.mxu0 0.0
    %276 = vmatpush1.msra.mxu0 0.0
    %277 = vmatprep.subr.mxu0 0.0
    %278 = vmatpush1.msra.mxu0 0.0
    %279 = vmatprep.subr.mxu0 0.0
    %280 = vmatpush1.msra.mxu0 0.0
    %281 = vmatprep.subr.mxu0 0.0
    %282 = vmatpush1.msra.mxu0 0.0
    %283 = vmatprep.subr.mxu0 0.0
    %284 = vmatpush1.msra.mxu0 0.0
    %285 = vmatprep.subr.mxu0 0.0
    %286 = vmatpush1.msra.mxu0 0.0
    %287 = vmatprep.subr.mxu0 0.0
    %288 = vmatpush1.msra.mxu0 0.0
    %289 = vmatprep.subr.mxu0 0.0
    %290 = vmatpush1.msra.mxu0 0.0
    %291 = vmatprep.subr.mxu0 0.0
    %292 = vmatpush1.msra.mxu0 0.0
    %293 = vmatprep.mubr.f32.mxu0 0.0
    %294 = vmatmul.mubr.f32.gmra.mrb[0].mxu0 %v224
    %v295 = vpop.f32.mrb[0].mxu0
    %v296 = vadd.f32 0.0, %v295
    %v297 = vpop.f32.mrb[0].mxu0
    %298 = vdwg.mxu0
    %v299 = vadd.f32 %v228, %v296
    %v300 = vtanh.pop %v299
    %s301 = scalar_lea.vmem [#allocation9], 16
    %302 = vst [vmem:[%s301] sm:$0xff] %v300
    %s303 = scalar_lea.vmem [#allocation3], 24
    %v304 = vld [vmem:[%s303] sm:$0xff]
    %305 = vmatprep.subr.mxu0 0.0
    %306 = vmatpush1.msra.mxu0 %v60
    %307 = vmatprep.subr.mxu0 0.0
    %308 = vmatpush1.msra.mxu0 %v61
    %309 = vmatprep.subr.mxu0 0.0
    %310 = vmatpush1.msra.mxu0 %v62
    %311 = vmatprep.subr.mxu0 0.0
    %312 = vmatpush1.msra.mxu0 %v63
    %313 = vmatprep.subr.mxu0 0.0
    %314 = vmatpush1.msra.mxu0 %v64
    %315 = vmatprep.subr.mxu0 0.0
    %316 = vmatpush1.msra.mxu0 %v65
    %317 = vmatprep.subr.mxu0 0.0
    %318 = vmatpush1.msra.mxu0 %v66
    %319 = vmatprep.subr.mxu0 0.0
    %320 = vmatpush1.msra.mxu0 %v67
    %321 = vmatprep.subr.mxu0 0.0
    %322 = vmatpush1.msra.mxu0 %v68
    %323 = vmatprep.subr.mxu0 0.0
    %324 = vmatpush1.msra.mxu0 %v69
    %325 = vmatprep.subr.mxu0 0.0
    %326 = vmatpush1.msra.mxu0 %v70
    %327 = vmatprep.subr.mxu0 0.0
    %328 = vmatpush1.msra.mxu0 %v71
    %329 = vmatprep.subr.mxu0 0.0
    %330 = vmatpush1.msra.mxu0 %v72
    %331 = vmatprep.subr.mxu0 0.0
    %332 = vmatpush1.msra.mxu0 %v73
    %333 = vmatprep.subr.mxu0 0.0
    %334 = vmatpush1.msra.mxu0 %v74
    %335 = vmatprep.subr.mxu0 0.0
    %336 = vmatpush1.msra.mxu0 %v75
    %337 = vmatprep.subr.mxu0 0.0
    %338 = vmatpush1.msra.mxu0 0.0
    %339 = vmatprep.subr.mxu0 0.0
    %340 = vmatpush1.msra.mxu0 0.0
    %341 = vmatprep.subr.mxu0 0.0
    %342 = vmatpush1.msra.mxu0 0.0
    %343 = vmatprep.subr.mxu0 0.0
    %344 = vmatpush1.msra.mxu0 0.0
    %345 = vmatprep.subr.mxu0 0.0
    %346 = vmatpush1.msra.mxu0 0.0
    %347 = vmatprep.subr.mxu0 0.0
    %348 = vmatpush1.msra.mxu0 0.0
    %349 = vmatprep.subr.mxu0 0.0
    %350 = vmatpush1.msra.mxu0 0.0
    %351 = vmatprep.subr.mxu0 0.0
    %352 = vmatpush1.msra.mxu0 0.0
    %353 = vmatprep.subr.mxu0 0.0
    %354 = vmatpush1.msra.mxu0 0.0
    %355 = vmatprep.subr.mxu0 0.0
    %356 = vmatpush1.msra.mxu0 0.0
    %357 = vmatprep.subr.mxu0 0.0
    %358 = vmatpush1.msra.mxu0 0.0
    %359 = vmatprep.subr.mxu0 0.0
    %360 = vmatpush1.msra.mxu0 0.0
    %361 = vmatprep.subr.mxu0 0.0
    %362 = vmatpush1.msra.mxu0 0.0
    %363 = vmatprep.subr.mxu0 0.0
    %364 = vmatpush1.msra.mxu0 0.0
    %365 = vmatprep.subr.mxu0 0.0
    %366 = vmatpush1.msra.mxu0 0.0
    %367 = vmatprep.subr.mxu0 0.0
    %368 = vmatpush1.msra.mxu0 0.0
    %369 = vmatprep.mubr.f32.mxu0 0.0
    %370 = vmatmul.mubr.f32.gmra.mrb[0].mxu0 %v300
    %v371 = vpop.f32.mrb[0].mxu0
    %v372 = vadd.f32 0.0, %v371
    %v373 = vpop.f32.mrb[0].mxu0
    %374 = vdwg.mxu0
    %v375 = vadd.f32 %v304, %v372
    %v376 = vtanh.pop %v375
    %s377 = scalar_lea.vmem [#allocation9], 24
    %378 = vst [vmem:[%s377] sm:$0xff] %v376
    %s379 = scalar_lea.vmem [#allocation3], 32
    %v380 = vld [vmem:[%s379] sm:$0xff]
    %381 = vmatprep.subr.mxu0 0.0
    %382 = vmatpush1.msra.mxu0 %v60
    %383 = vmatprep.subr.mxu0 0.0
    %384 = vmatpush1.msra.mxu0 %v61
    %385 = vmatprep.subr.mxu0 0.0
    %386 = vmatpush1.msra.mxu0 %v62
    %387 = vmatprep.subr.mxu0 0.0
    %388 = vmatpush1.msra.mxu0 %v63
    %389 = vmatprep.subr.mxu0 0.0
    %390 = vmatpush1.msra.mxu0 %v64
    %391 = vmatprep.subr.mxu0 0.0
    %392 = vmatpush1.msra.mxu0 %v65
    %393 = vmatprep.subr.mxu0 0.0
    %394 = vmatpush1.msra.mxu0 %v66
    %395 = vmatprep.subr.mxu0 0.0
    %396 = vmatpush1.msra.mxu0 %v67
    %397 = vmatprep.subr.mxu0 0.0
    %398 = vmatpush1.msra.mxu0 %v68
    %399 = vmatprep.subr.mxu0 0.0
    %400 = vmatpush1.msra.mxu0 %v69
    %401 = vmatprep.subr.mxu0 0.0
    %402 = vmatpush1.msra.mxu0 %v70
    %403 = vmatprep.subr.mxu0 0.0
    %404 = vmatpush1.msra.mxu0 %v71
    %405 = vmatprep.subr.mxu0 0.0
    %406 = vmatpush1.msra.mxu0 %v72
    %407 = vmatprep.subr.mxu0 0.0
    %408 = vmatpush1.msra.mxu0 %v73
    %409 = vmatprep.subr.mxu0 0.0
    %410 = vmatpush1.msra.mxu0 %v74
    %411 = vmatprep.subr.mxu0 0.0
    %412 = vmatpush1.msra.mxu0 %v75
    %413 = vmatprep.subr.mxu0 0.0
    %414 = vmatpush1.msra.mxu0 0.0
    %415 = vmatprep.subr.mxu0 0.0
    %416 = vmatpush1.msra.mxu0 0.0
    %417 = vmatprep.subr.mxu0 0.0
    %418 = vmatpush1.msra.mxu0 0.0
    %419 = vmatprep.subr.mxu0 0.0
    %420 = vmatpush1.msra.mxu0 0.0
    %421 = vmatprep.subr.mxu0 0.0
    %422 = vmatpush1.msra.mxu0 0.0
    %423 = vmatprep.subr.mxu0 0.0
    %424 = vmatpush1.msra.mxu0 0.0
    %425 = vmatprep.subr.mxu0 0.0
    %426 = vmatpush1.msra.mxu0 0.0
    %427 = vmatprep.subr.mxu0 0.0
    %428 = vmatpush1.msra.mxu0 0.0
    %429 = vmatprep.subr.mxu0 0.0
    %430 = vmatpush1.msra.mxu0 0.0
    %431 = vmatprep.subr.mxu0 0.0
    %432 = vmatpush1.msra.mxu0 0.0
    %433 = vmatprep.subr.mxu0 0.0
    %434 = vmatpush1.msra.mxu0 0.0
    %435 = vmatprep.subr.mxu0 0.0
    %436 = vmatpush1.msra.mxu0 0.0
    %437 = vmatprep.subr.mxu0 0.0
    %438 = vmatpush1.msra.mxu0 0.0
    %439 = vmatprep.subr.mxu0 0.0
    %440 = vmatpush1.msra.mxu0 0.0
    %441 = vmatprep.subr.mxu0 0.0
    %442 = vmatpush1.msra.mxu0 0.0
    %443 = vmatprep.subr.mxu0 0.0
    %444 = vmatpush1.msra.mxu0 0.0
    %445 = vmatprep.mubr.f32.mxu0 0.0
    %446 = vmatmul.mubr.f32.gmra.mrb[0].mxu0 %v376
    %v447 = vpop.f32.mrb[0].mxu0
    %v448 = vadd.f32 0.0, %v447
    %v449 = vpop.f32.mrb[0].mxu0
    %450 = vdwg.mxu0
    %v451 = vadd.f32 %v380, %v448
    %v452 = vtanh.pop %v451
    %s453 = scalar_lea.vmem [#allocation9], 32
    %454 = vst [vmem:[%s453] sm:$0xff] %v452
    %s455 = scalar_lea.vmem [#allocation3], 40
    %v456 = vld [vmem:[%s455] sm:$0xff]
    %457 = vmatprep.subr.mxu0 0.0
    %458 = vmatpush1.msra.mxu0 %v60
    %459 = vmatprep.subr.mxu0 0.0
    %460 = vmatpush1.msra.mxu0 %v61
    %461 = vmatprep.subr.mxu0 0.0
    %462 = vmatpush1.msra.mxu0 %v62
    %463 = vmatprep.subr.mxu0 0.0
    %464 = vmatpush1.msra.mxu0 %v63
    %465 = vmatprep.subr.mxu0 0.0
    %466 = vmatpush1.msra.mxu0 %v64
    %467 = vmatprep.subr.mxu0 0.0
    %468 = vmatpush1.msra.mxu0 %v65
    %469 = vmatprep.subr.mxu0 0.0
    %470 = vmatpush1.msra.mxu0 %v66
    %471 = vmatprep.subr.mxu0 0.0
    %472 = vmatpush1.msra.mxu0 %v67
    %473 = vmatprep.subr.mxu0 0.0
    %474 = vmatpush1.msra.mxu0 %v68
    %475 = vmatprep.subr.mxu0 0.0
    %476 = vmatpush1.msra.mxu0 %v69
    %477 = vmatprep.subr.mxu0 0.0
    %478 = vmatpush1.msra.mxu0 %v70
    %479 = vmatprep.subr.mxu0 0.0
    %480 = vmatpush1.msra.mxu0 %v71
    %481 = vmatprep.subr.mxu0 0.0
    %482 = vmatpush1.msra.mxu0 %v72
    %483 = vmatprep.subr.mxu0 0.0
    %484 = vmatpush1.msra.mxu0 %v73
    %485 = vmatprep.subr.mxu0 0.0
    %486 = vmatpush1.msra.mxu0 %v74
    %487 = vmatprep.subr.mxu0 0.0
    %488 = vmatpush1.msra.mxu0 %v75
    %489 = vmatprep.subr.mxu0 0.0
    %490 = vmatpush1.msra.mxu0 0.0
    %491 = vmatprep.subr.mxu0 0.0
    %492 = vmatpush1.msra.mxu0 0.0
    %493 = vmatprep.subr.mxu0 0.0
    %494 = vmatpush1.msra.mxu0 0.0
    %495 = vmatprep.subr.mxu0 0.0
    %496 = vmatpush1.msra.mxu0 0.0
    %497 = vmatprep.subr.mxu0 0.0
    %498 = vmatpush1.msra.mxu0 0.0
    %499 = vmatprep.subr.mxu0 0.0
    %500 = vmatpush1.msra.mxu0 0.0
    %501 = vmatprep.subr.mxu0 0.0
    %502 = vmatpush1.msra.mxu0 0.0
    %503 = vmatprep.subr.mxu0 0.0
    %504 = vmatpush1.msra.mxu0 0.0
    %505 = vmatprep.subr.mxu0 0.0
    %506 = vmatpush1.msra.mxu0 0.0
    %507 = vmatprep.subr.mxu0 0.0
    %508 = vmatpush1.msra.mxu0 0.0
    %509 = vmatprep.subr.mxu0 0.0
    %510 = vmatpush1.msra.mxu0 0.0
    %511 = vmatprep.subr.mxu0 0.0
    %512 = vmatpush1.msra.mxu0 0.0
    %513 = vmatprep.subr.mxu0 0.0
    %514 = vmatpush1.msra.mxu0 0.0
    %515 = vmatprep.subr.mxu0 0.0
    %516 = vmatpush1.msra.mxu0 0.0
    %517 = vmatprep.subr.mxu0 0.0
    %518 = vmatpush1.msra.mxu0 0.0
    %519 = vmatprep.subr.mxu0 0.0
    %520 = vmatpush1.msra.mxu0 0.0
    %521 = vmatprep.mubr.f32.mxu0 0.0
    %522 = vmatmul.mubr.f32.gmra.mrb[0].mxu0 %v452
    %v523 = vpop.f32.mrb[0].mxu0
    %v524 = vadd.f32 0.0, %v523
    %v525 = vpop.f32.mrb[0].mxu0
    %526 = vdwg.mxu0
    %v527 = vadd.f32 %v456, %v524
    %v528 = vtanh.pop %v527
    %s529 = scalar_lea.vmem [#allocation9], 40
    %530 = vst [vmem:[%s529] sm:$0xff] %v528
    %s531 = scalar_lea.vmem [#allocation3], 48
    %v532 = vld [vmem:[%s531] sm:$0xff]
    %533 = vmatprep.subr.mxu0 0.0
    %534 = vmatpush1.msra.mxu0 %v60
    %535 = vmatprep.subr.mxu0 0.0
    %536 = vmatpush1.msra.mxu0 %v61
    %537 = vmatprep.subr.mxu0 0.0
    %538 = vmatpush1.msra.mxu0 %v62
    %539 = vmatprep.subr.mxu0 0.0
    %540 = vmatpush1.msra.mxu0 %v63
    %541 = vmatprep.subr.mxu0 0.0
    %542 = vmatpush1.msra.mxu0 %v64
    %543 = vmatprep.subr.mxu0 0.0
    %544 = vmatpush1.msra.mxu0 %v65
    %545 = vmatprep.subr.mxu0 0.0
    %546 = vmatpush1.msra.mxu0 %v66
    %547 = vmatprep.subr.mxu0 0.0
    %548 = vmatpush1.msra.mxu0 %v67
    %549 = vmatprep.subr.mxu0 0.0
    %550 = vmatpush1.msra.mxu0 %v68
    %551 = vmatprep.subr.mxu0 0.0
    %552 = vmatpush1.msra.mxu0 %v69
    %553 = vmatprep.subr.mxu0 0.0
    %554 = vmatpush1.msra.mxu0 %v70
    %555 = vmatprep.subr.mxu0 0.0
    %556 = vmatpush1.msra.mxu0 %v71
    %557 = vmatprep.subr.mxu0 0.0
    %558 = vmatpush1.msra.mxu0 %v72
    %559 = vmatprep.subr.mxu0 0.0
    %560 = vmatpush1.msra.mxu0 %v73
    %561 = vmatprep.subr.mxu0 0.0
    %562 = vmatpush1.msra.mxu0 %v74
    %563 = vmatprep.subr.mxu0 0.0
    %564 = vmatpush1.msra.mxu0 %v75
    %565 = vmatprep.subr.mxu0 0.0
    %566 = vmatpush1.msra.mxu0 0.0
    %567 = vmatprep.subr.mxu0 0.0
    %568 = vmatpush1.msra.mxu0 0.0
    %569 = vmatprep.subr.mxu0 0.0
    %570 = vmatpush1.msra.mxu0 0.0
    %571 = vmatprep.subr.mxu0 0.0
    %572 = vmatpush1.msra.mxu0 0.0
    %573 = vmatprep.subr.mxu0 0.0
    %574 = vmatpush1.msra.mxu0 0.0
    %575 = vmatprep.subr.mxu0 0.0
    %576 = vmatpush1.msra.mxu0 0.0
    %577 = vmatprep.subr.mxu0 0.0
    %578 = vmatpush1.msra.mxu0 0.0
    %579 = vmatprep.subr.mxu0 0.0
    %580 = vmatpush1.msra.mxu0 0.0
    %581 = vmatprep.subr.mxu0 0.0
    %582 = vmatpush1.msra.mxu0 0.0
    %583 = vmatprep.subr.mxu0 0.0
    %584 = vmatpush1.msra.mxu0 0.0
    %585 = vmatprep.subr.mxu0 0.0
    %586 = vmatpush1.msra.mxu0 0.0
    %587 = vmatprep.subr.mxu0 0.0
    %588 = vmatpush1.msra.mxu0 0.0
    %589 = vmatprep.subr.mxu0 0.0
    %590 = vmatpush1.msra.mxu0 0.0
    %591 = vmatprep.subr.mxu0 0.0
    %592 = vmatpush1.msra.mxu0 0.0
    %593 = vmatprep.subr.mxu0 0.0
    %594 = vmatpush1.msra.mxu0 0.0
    %595 = vmatprep.subr.mxu0 0.0
    %596 = vmatpush1.msra.mxu0 0.0
    %597 = vmatprep.mubr.f32.mxu0 0.0
    %598 = vmatmul.mubr.f32.gmra.mrb[0].mxu0 %v528
    %v599 = vpop.f32.mrb[0].mxu0
    %v600 = vadd.f32 0.0, %v599
    %v601 = vpop.f32.mrb[0].mxu0
    %602 = vdwg.mxu0
    %v603 = vadd.f32 %v532, %v600
    %v604 = vtanh.pop %v603
    %s605 = scalar_lea.vmem [#allocation9], 48
    %606 = vst [vmem:[%s605] sm:$0xff] %v604
    %s607 = scalar_lea.vmem [#allocation3], 56
    %v608 = vld [vmem:[%s607] sm:$0xff]
    %609 = vmatprep.subr.mxu0 0.0
    %610 = vmatpush1.msra.mxu0 %v60
    %611 = vmatprep.subr.mxu0 0.0
    %612 = vmatpush1.msra.mxu0 %v61
    %613 = vmatprep.subr.mxu0 0.0
    %614 = vmatpush1.msra.mxu0 %v62
    %615 = vmatprep.subr.mxu0 0.0
    %616 = vmatpush1.msra.mxu0 %v63
    %617 = vmatprep.subr.mxu0 0.0
    %618 = vmatpush1.msra.mxu0 %v64
    %619 = vmatprep.subr.mxu0 0.0
    %620 = vmatpush1.msra.mxu0 %v65
    %621 = vmatprep.subr.mxu0 0.0
    %622 = vmatpush1.msra.mxu0 %v66
    %623 = vmatprep.subr.mxu0 0.0
    %624 = vmatpush1.msra.mxu0 %v67
    %625 = vmatprep.subr.mxu0 0.0
    %626 = vmatpush1.msra.mxu0 %v68
    %627 = vmatprep.subr.mxu0 0.0
    %628 = vmatpush1.msra.mxu0 %v69
    %629 = vmatprep.subr.mxu0 0.0
    %630 = vmatpush1.msra.mxu0 %v70
    %631 = vmatprep.subr.mxu0 0.0
    %632 = vmatpush1.msra.mxu0 %v71
    %633 = vmatprep.subr.mxu0 0.0
    %634 = vmatpush1.msra.mxu0 %v72
    %635 = vmatprep.subr.mxu0 0.0
    %636 = vmatpush1.msra.mxu0 %v73
    %637 = vmatprep.subr.mxu0 0.0
    %638 = vmatpush1.msra.mxu0 %v74
    %639 = vmatprep.subr.mxu0 0.0
    %640 = vmatpush1.msra.mxu0 %v75
    %641 = vmatprep.subr.mxu0 0.0
    %642 = vmatpush1.msra.mxu0 0.0
    %643 = vmatprep.subr.mxu0 0.0
    %644 = vmatpush1.msra.mxu0 0.0
    %645 = vmatprep.subr.mxu0 0.0
    %646 = vmatpush1.msra.mxu0 0.0
    %647 = vmatprep.subr.mxu0 0.0
    %648 = vmatpush1.msra.mxu0 0.0
    %649 = vmatprep.subr.mxu0 0.0
    %650 = vmatpush1.msra.mxu0 0.0
    %651 = vmatprep.subr.mxu0 0.0
    %652 = vmatpush1.msra.mxu0 0.0
    %653 = vmatprep.subr.mxu0 0.0
    %654 = vmatpush1.msra.mxu0 0.0
    %655 = vmatprep.subr.mxu0 0.0
    %656 = vmatpush1.msra.mxu0 0.0
    %657 = vmatprep.subr.mxu0 0.0
    %658 = vmatpush1.msra.mxu0 0.0
    %659 = vmatprep.subr.mxu0 0.0
    %660 = vmatpush1.msra.mxu0 0.0
    %661 = vmatprep.subr.mxu0 0.0
    %662 = vmatpush1.msra.mxu0 0.0
    %663 = vmatprep.subr.mxu0 0.0
    %664 = vmatpush1.msra.mxu0 0.0
    %665 = vmatprep.subr.mxu0 0.0
    %666 = vmatpush1.msra.mxu0 0.0
    %667 = vmatprep.subr.mxu0 0.0
    %668 = vmatpush1.msra.mxu0 0.0
    %669 = vmatprep.subr.mxu0 0.0
    %670 = vmatpush1.msra.mxu0 0.0
    %671 = vmatprep.subr.mxu0 0.0
    %672 = vmatpush1.msra.mxu0 0.0
    %673 = vmatprep.mubr.f32.mxu0 0.0
    %674 = vmatmul.mubr.f32.gmra.mrb[0].mxu0 %v604
    %v675 = vpop.f32.mrb[0].mxu0
    %v676 = vadd.f32 0.0, %v675
    %v677 = vpop.f32.mrb[0].mxu0
    %678 = vdwg.mxu0
    %v679 = vadd.f32 %v608, %v676
    %v680 = vtanh.pop %v679
    %s681 = scalar_lea.vmem [#allocation9], 56
    %682 = vst [vmem:[%s681] sm:$0xff] %v680
    %683 = vst [vmem:[#allocation2] sm:$0xff] %v680
    // Predicated region
    $region30: #{tpu_custom_call.1} parent=1 // pred_check
      _
    $region31: #{tpu_custom_call.1} parent=1 // pred_check_branch
      %685 = sbr.rel (0) target = $region33
    $region32: #{tpu_custom_call.1} parent=1 // pred_region
      %s687 = ssub.s32 1024, 1024
      %688 = vsyncadd [#allocation5], %s687
      %s689 = sshll.u32 [#allocation9], 4
      %s690 = int_to_ptr.vmem [resolvable:$true] %s689
      %695 = dma.vmem_to_hbm [thread:$0]  %s690, 1024, %s3, [#allocation5], 128, 128, 8
    $region33: #{tpu_custom_call.1} parent=1 // pred_fallthru
      _
    // Predicated region
    $region34: #{tpu_custom_call.1} parent=1 // pred_check
      _
    $region35: #{tpu_custom_call.1} parent=1 // pred_check_branch
      %697 = sbr.rel (0) target = $region37
    $region36: #{tpu_custom_call.1} parent=1 // pred_region
      %698 = dma.done [#allocation5], 1024
    $region37: #{tpu_custom_call.1} parent=1 // pred_fallthru
      _
    %699 = vsyncpa [#allocation4], 1
    %700 = vsyncpa [#allocation7], 1
    %701 = vsyncpa [#allocation5], 1

</llo_original>
